<compile_context>
chip_gen: v7x
topology: tpu7x:2x2x1
jax: 0.10.0
libtpu: 0.0.40
codegen_flags: <defaults>
</compile_context>

<pallas_src>
import jax
import jax.numpy as jnp
from jax.experimental import pallas as pl
from jax.experimental.pallas import tpu as pltpu

LATENT_DIM = 10
HIDDEN_DIM = 64
NUM_CLASSES = 4

# Target rows per grid step.  4096 rows amortizes the ~0.35 us/step overhead
# (per-step HBM traffic ~224 KiB) while the lane-padded double-buffered
# footprint (~8 MiB) stays inside v5e's 16 MiB scoped-VMEM default.
DEFAULT_TILE_TARGET = 4096


def _round_up(v, m):
    return ((v + m - 1) // m) * m


def _classifier_kernel(x_ref, w1_ref, b1_ref, w2_ref, b2_ref, o_ref):
    # Two small MXU matmuls + VPU bias/ReLU on one batch tile.
    x = x_ref[...]
    h = jnp.dot(
        x,
        w1_ref[...],
        preferred_element_type=jnp.float32,
        precision=jax.lax.Precision.HIGHEST,
    )
    h = jnp.maximum(h + b1_ref[...], 0.0)
    out = jnp.dot(
        h,
        w2_ref[...],
        preferred_element_type=jnp.float32,
        precision=jax.lax.Precision.HIGHEST,
    )
    o_ref[...] = (out + b2_ref[...]).astype(o_ref.dtype)


def classifier_forward(x, w1, b1, w2, b2, *, tile_n=None,
                       tile_target=DEFAULT_TILE_TARGET):
    """Run the 2-layer MLP classifier as a batch-tiled Pallas kernel.

    x:  (N, latent_dim) float32
    w1: (latent_dim, hidden)    b1: (1, hidden)
    w2: (hidden, num_classes)   b2: (1, num_classes)
    returns: (N, num_classes) float32 logits
    """
    n, latent = x.shape
    hidden = w1.shape[1]
    num_classes = w2.shape[1]

    # ---- Adaptive tile selection -------------------------------------------
    n8 = max(8, _round_up(n, 8))
    if tile_n is None:
        steps = pl.cdiv(n8, tile_target)
        # v7x has 2 TensorCores: make sure the "parallel" batch axis has at
        # least 2 grid steps so both cores get work (no-op on v5e/v6e).
        if steps < 2 and n8 >= 16:
            steps = 2
        tile_n = _round_up(pl.cdiv(n8, steps), 8)
    else:
        tile_n = _round_up(min(tile_n, n8), 8)
    steps = pl.cdiv(n8, tile_n)
    n_pad = steps * tile_n

    if n_pad != n:
        x = jnp.pad(x, ((0, n_pad - n), (0, 0)))

    # ---- VMEM budget (lane-padded tiles, double-buffered) -------------------
    lanes, subl = 128, 8
    x_tile_bytes = tile_n * _round_up(latent, lanes) * 4
    o_tile_bytes = tile_n * _round_up(num_classes, lanes) * 4
    param_bytes_vmem = 4 * (
        _round_up(latent, subl) * _round_up(hidden, lanes)
        + subl * _round_up(hidden, lanes)
        + _round_up(hidden, subl) * _round_up(num_classes, lanes)
        + subl * _round_up(num_classes, lanes)
    )
    vmem_limit = 2 * (x_tile_bytes + o_tile_bytes) + 2 * param_bytes_vmem + (2 << 20)
    vmem_limit = int(min(max(vmem_limit, 16 * 1024 * 1024), 64 * 1024 * 1024))

    param_bytes_hbm = 4 * (w1.size + b1.size + w2.size + b2.size)
    cost = pl.CostEstimate(
        flops=2 * n_pad * (latent * hidden + hidden * num_classes),
        transcendentals=0,
        bytes_accessed=n_pad * 4 * (latent + num_classes) + param_bytes_hbm,
    )

    out = pl.pallas_call(
        _classifier_kernel,
        out_shape=jax.ShapeDtypeStruct((n_pad, num_classes), jnp.float32),
        grid=(steps,),
        in_specs=[
            # x: tiled over batch, full (small) feature extent.
            pl.BlockSpec((tile_n, latent), lambda i: (i, 0)),
            # Weights / biases: constant block index -> fetched once, resident.
            pl.BlockSpec((latent, hidden), lambda i: (0, 0)),
            pl.BlockSpec((1, hidden), lambda i: (0, 0)),
            pl.BlockSpec((hidden, num_classes), lambda i: (0, 0)),
            pl.BlockSpec((1, num_classes), lambda i: (0, 0)),
        ],
        out_specs=pl.BlockSpec((tile_n, num_classes), lambda i: (i, 0)),
        compiler_params=pltpu.CompilerParams(
            # Batch tiles are independent -> megacore-shardable (v7x 2 TCs).
            dimension_semantics=("parallel",),
            vmem_limit_bytes=vmem_limit,
        ),
        cost_estimate=cost,
    )(x, w1, b1, w2, b2)

    return out[:n]


def init_params(key, latent_dim=LATENT_DIM, hidden=HIDDEN_DIM,
                num_classes=NUM_CLASSES):
    """Deterministic synthetic parameter init (mimics nn.Linear fan-in uniform)."""
    k1, k2, k3, k4 = jax.random.split(key, 4)
    bound1 = 1.0 / jnp.sqrt(latent_dim)
    bound2 = 1.0 / jnp.sqrt(hidden)
    w1 = jax.random.uniform(k1, (latent_dim, hidden), jnp.float32, -bound1, bound1)
    b1 = jax.random.uniform(k2, (1, hidden), jnp.float32, -bound1, bound1)
    w2 = jax.random.uniform(k3, (hidden, num_classes), jnp.float32, -bound2, bound2)
    b2 = jax.random.uniform(k4, (1, num_classes), jnp.float32, -bound2, bound2)
    return w1, b1, w2, b2


def _reference(x, w1, b1, w2, b2):
    h = jnp.dot(x, w1, precision=jax.lax.Precision.HIGHEST) + b1
    h = jnp.maximum(h, 0.0)
    return jnp.dot(h, w2, precision=jax.lax.Precision.HIGHEST) + b2


if __name__ == "__main__":
    key = jax.random.PRNGKey(0)
    k_x, k_x2, k_x3, k_p = jax.random.split(key, 4)
    w1, b1, w2, b2 = init_params(k_p)

    # Case 1: small ragged batch (pad-and-slice path; forced to 2 grid steps).
    batch = 10
    x = jax.random.normal(k_x, (batch, LATENT_DIM), dtype=jnp.float32)
    logits = classifier_forward(x, w1, b1, w2, b2)
    jax.block_until_ready(logits)
    ref = _reference(x, w1, b1, w2, b2)
    assert logits.shape == (batch, NUM_CLASSES)
    assert jnp.allclose(logits, ref, atol=2e-5, rtol=2e-5)

    # Case 2: explicit small tile forces several grid steps + ragged tail.
    batch2 = 40
    x2 = jax.random.normal(k_x2, (batch2, LATENT_DIM), dtype=jnp.float32)
    logits2 = classifier_forward(x2, w1, b1, w2, b2, tile_n=16)
    jax.block_until_ready(logits2)
    ref2 = _reference(x2, w1, b1, w2, b2)
    assert logits2.shape == (batch2, NUM_CLASSES)
    assert jnp.allclose(logits2, ref2, atol=2e-5, rtol=2e-5)

    # Case 3: larger batch exercising the adaptive tile selection (2 x 3000).
    batch3 = 6000
    x3 = jax.random.normal(k_x3, (batch3, LATENT_DIM), dtype=jnp.float32)
    logits3 = classifier_forward(x3, w1, b1, w2, b2)
    jax.block_until_ready(logits3)
    ref3 = _reference(x3, w1, b1, w2, b2)
    assert logits3.shape == (batch3, NUM_CLASSES)
    assert jnp.allclose(logits3, ref3, atol=2e-5, rtol=2e-5)

    print("KERNEL_OK")
</pallas_src>

<mosaic_0001>
module attributes {stable_mosaic.version = 11 : i64} {
  func.func @_classifier_kernel(%arg0: i32, %arg1: memref<8x10xf32, #tpu.memory_space<vmem>>, %arg2: memref<10x64xf32, #tpu.memory_space<vmem>>, %arg3: memref<1x64xf32, #tpu.memory_space<vmem>>, %arg4: memref<64x4xf32, #tpu.memory_space<vmem>>, %arg5: memref<1x4xf32, #tpu.memory_space<vmem>>, %arg6: memref<8x4xf32, #tpu.memory_space<vmem>>) attributes {dimension_semantics = [#tpu.dimension_semantics<parallel>], iteration_bounds = array<i64: 2>, scalar_prefetch = 0 : i64, scratch_operands = 0 : i64, tpu.core_type = #tpu.core_type<tc>, window_params = [{transform_indices = @transform_0, window_bounds = array<i64: 8, 10>}, {pipeline_mode = #tpu.pipeline_mode<synchronous>, transform_indices = @transform_1, window_bounds = array<i64: 10, 64>}, {pipeline_mode = #tpu.pipeline_mode<synchronous>, transform_indices = @transform_2, window_bounds = array<i64: 1, 64>}, {pipeline_mode = #tpu.pipeline_mode<synchronous>, transform_indices = @transform_3, window_bounds = array<i64: 64, 4>}, {pipeline_mode = #tpu.pipeline_mode<synchronous>, transform_indices = @transform_4, window_bounds = array<i64: 1, 4>}, {transform_indices = @transform_5, window_bounds = array<i64: 8, 4>}]} {
    %c0 = arith.constant 0 : index
    %c0_0 = arith.constant 0 : index
    %0 = vector.load %arg1[%c0, %c0_0] : memref<8x10xf32, #tpu.memory_space<vmem>>, vector<8x10xf32>
    %c0_1 = arith.constant 0 : index
    %c0_2 = arith.constant 0 : index
    %1 = vector.load %arg2[%c0_1, %c0_2] : memref<10x64xf32, #tpu.memory_space<vmem>>, vector<10x64xf32>
    %cst = arith.constant dense<0.000000e+00> : vector<8x64xf32>
    %2 = tpu.matmul %0, %1, %cst {dimension_numbers = #tpu.dot_dimension_numbers<[1], [0], [0], [1], [0, 0, 1, 1], [], []>, precision = #tpu.contract_precision<fp32>} : vector<8x10xf32>, vector<10x64xf32>, vector<8x64xf32> -> vector<8x64xf32>
    %c0_3 = arith.constant 0 : index
    %c0_4 = arith.constant 0 : index
    %3 = vector.load %arg3[%c0_3, %c0_4] : memref<1x64xf32, #tpu.memory_space<vmem>>, vector<1x64xf32>
    %4 = vector.broadcast %3 : vector<1x64xf32> to vector<8x64xf32>
    %5 = arith.addf %2, %4 : vector<8x64xf32>
    %cst_5 = arith.constant 0.000000e+00 : f32
    %6 = vector.broadcast %cst_5 : f32 to vector<8x64xf32>
    %7 = arith.maximumf %5, %6 : vector<8x64xf32>
    %c0_6 = arith.constant 0 : index
    %c0_7 = arith.constant 0 : index
    %8 = vector.load %arg4[%c0_6, %c0_7] : memref<64x4xf32, #tpu.memory_space<vmem>>, vector<64x4xf32>
    %cst_8 = arith.constant dense<0.000000e+00> : vector<8x4xf32>
    %9 = tpu.matmul %7, %8, %cst_8 {dimension_numbers = #tpu.dot_dimension_numbers<[1], [0], [0], [1], [0, 0, 1, 1], [], []>, precision = #tpu.contract_precision<fp32>} : vector<8x64xf32>, vector<64x4xf32>, vector<8x4xf32> -> vector<8x4xf32>
    %c0_9 = arith.constant 0 : index
    %c0_10 = arith.constant 0 : index
    %10 = vector.load %arg5[%c0_9, %c0_10] : memref<1x4xf32, #tpu.memory_space<vmem>>, vector<1x4xf32>
    %11 = vector.broadcast %10 : vector<1x4xf32> to vector<8x4xf32>
    %12 = arith.addf %9, %11 : vector<8x4xf32>
    %c0_11 = arith.constant 0 : index
    %c0_12 = arith.constant 0 : index
    %13 = vector.load %arg6[%c0_11, %c0_12] : memref<8x4xf32, #tpu.memory_space<vmem>>, vector<8x4xf32>
    tpu.vector_store %arg6[%c0_11, %c0_12], %12 {strides = array<i32>} : memref<8x4xf32, #tpu.memory_space<vmem>>, vector<8x4xf32>,
    return
  }
  func.func @transform_0(%arg0: i32) -> (i32, i32) {
    %c0_i32 = arith.constant 0 : i32
    %c0_i32_0 = arith.constant 0 : i32
    return %arg0, %c0_i32 : i32, i32
  }
  func.func @transform_1(%arg0: i32) -> (i32, i32) {
    %c0_i32 = arith.constant 0 : i32
    %c0_i32_0 = arith.constant 0 : i32
    %c0_i32_1 = arith.constant 0 : i32
    return %c0_i32, %c0_i32_0 : i32, i32
  }
  func.func @transform_2(%arg0: i32) -> (i32, i32) {
    %c0_i32 = arith.constant 0 : i32
    %c0_i32_0 = arith.constant 0 : i32
    %c0_i32_1 = arith.constant 0 : i32
    return %c0_i32, %c0_i32_0 : i32, i32
  }
  func.func @transform_3(%arg0: i32) -> (i32, i32) {
    %c0_i32 = arith.constant 0 : i32
    %c0_i32_0 = arith.constant 0 : i32
    %c0_i32_1 = arith.constant 0 : i32
    return %c0_i32, %c0_i32_0 : i32, i32
  }
  func.func @transform_4(%arg0: i32) -> (i32, i32) {
    %c0_i32 = arith.constant 0 : i32
    %c0_i32_0 = arith.constant 0 : i32
    %c0_i32_1 = arith.constant 0 : i32
    return %c0_i32, %c0_i32_0 : i32, i32
  }
  func.func @transform_5(%arg0: i32) -> (i32, i32) {
    %c0_i32 = arith.constant 0 : i32
    %c0_i32_0 = arith.constant 0 : i32
    return %arg0, %c0_i32 : i32, i32
  }
}

</mosaic_0001>

<llo_original>
// kernel: tpu_custom_call.1
$region0: #{tpu_custom_call.1}
  #allocation0 [shape = 'u32[]', space=smem, size = 0x4, offset = 0x4, fixed_abs, tag = 'smem constant byte address 0x4 - core index']
  #allocation1 [shape = 'u32[144,128]{1,0:T(1,128)}', space=vmem, size = 0x12000, scoped, tag = 'internal scratch']
  %s0 = inlined_call_operand.vmem [shape: f32[16,10], index: 0, kind: input, shape index: {}]
  %s1 = inlined_call_operand.vmem [shape: f32[10,64], index: 1, kind: input, shape index: {}]
  %s2 = inlined_call_operand.vmem [shape: f32[1,64], index: 2, kind: input, shape index: {}]
  %s3 = inlined_call_operand.vmem [shape: f32[64,4], index: 3, kind: input, shape index: {}]
  %s4 = inlined_call_operand.vmem [shape: f32[1,4], index: 4, kind: input, shape index: {}]
  %s5 = inlined_call_operand.vmem [shape: f32[16,4], index: 5, kind: output, shape index: {}]
  %s6 = sld [smem:[#allocation0]]
  $region53: #{tpu_custom_call.1} parent=0
    _
  %s8 = ssub.s32 1, %s6
  %s9 = scalar_select 0, %s8, %s6
  loop: start=0, step=1, limit=4
  $region2: #{tpu_custom_call.1} parent=0 // loop_pre_header
    _
  $region3: #{tpu_custom_call.1} parent=0 // loop_header
    %s11 = sphi 0, %s15
    %p12 = scmp.ge.s32.totalorder %s11, 4
    %s21 = sphi 0, %s23
    %s24 = sphi 0, %s21
    %s25 = sphi 0, %s24
    %s41 = sphi 0, %s25
    %s45 = sphi 0, %s45
    %s47 = sphi 0, %s45
    %s48 = sphi 0, %s47
    %s62 = sphi 0, %s48
    %s66 = sphi 0, %s66
    %s68 = sphi 0, %s66
    %s69 = sphi 0, %s68
    %s83 = sphi 0, %s69
    %s87 = sphi 0, %s87
    %s89 = sphi 0, %s87
    %s90 = sphi 0, %s89
    %s104 = sphi 0, %s90
    %s108 = sphi 0, %s108
    %s110 = sphi 0, %s108
    %s111 = sphi 0, %s110
    %s125 = sphi 0, %s111
    %s131 = sphi 0, %s133
    %s134 = sphi 0, %s131
    %s135 = sphi 0, %s134
    %s151 = sphi 0, %s135
  $region4: #{tpu_custom_call.1} parent=0 // loop_header_branch
    %14 = sbr.rel (%p12) target = $region8
  $region5: #{tpu_custom_call.1} parent=0 // loop_body
    %s16 = ssub.s32 %s11, 1
    %s17 = ssub.s32 %s11, 2
    %s18 = sadd.s32 %s11, 1
    %s19 = ssub.s32 %s11, %s18
    %p20 = scmp.eq.s32.totalorder %s19, 0
    %s22 = sadd.s32 %s21, 1
    %s23 = scalar_select %p20, %s21, %s22
    %p26 = pneg %p20
    %p27 = scmp.eq.s32.totalorder %s11, 1
    %p28 = por %p26, %p27
    %p29 = scmp.ne.s32.totalorder %s21, %s24
    %p30 = scmp.eq.s32.totalorder %s11, 0
    %p31 = por %p29, %p30
    %p32 = scmp.ne.s32.totalorder %s21, %s24
    %p33 = scmp.eq.s32.totalorder %s16, 1
    %p34 = por %p32, %p33
    %p35 = scmp.ne.s32.totalorder %s24, %s25
    %p36 = scmp.eq.s32.totalorder %s16, 0
    %p37 = por %p35, %p36
    %p38 = scmp.ne.s32.totalorder %s24, %s25
    %p39 = scmp.eq.s32.totalorder %s17, 1
    %p40 = por %p38, %p39
    %p42 = scmp.ne.s32.totalorder %s25, %s41
    %p43 = scmp.eq.s32.totalorder %s17, 0
    %p44 = por %p42, %p43
    %s46 = sadd.s32 %s45, 1
    %p49 = scmp.eq.s32.totalorder %s11, 1
    %p50 = scmp.ne.s32.totalorder %s45, %s47
    %p51 = scmp.eq.s32.totalorder %s11, 0
    %p52 = por %p50, %p51
    %p53 = scmp.ne.s32.totalorder %s45, %s47
    %p54 = scmp.eq.s32.totalorder %s16, 1
    %p55 = por %p53, %p54
    %p56 = scmp.ne.s32.totalorder %s47, %s48
    %p57 = scmp.eq.s32.totalorder %s16, 0
    %p58 = por %p56, %p57
    %p59 = scmp.ne.s32.totalorder %s47, %s48
    %p60 = scmp.eq.s32.totalorder %s17, 1
    %p61 = por %p59, %p60
    %p63 = scmp.ne.s32.totalorder %s48, %s62
    %p64 = scmp.eq.s32.totalorder %s17, 0
    %p65 = por %p63, %p64
    %s67 = sadd.s32 %s66, 1
    %p70 = scmp.eq.s32.totalorder %s11, 1
    %p71 = scmp.ne.s32.totalorder %s66, %s68
    %p72 = scmp.eq.s32.totalorder %s11, 0
    %p73 = por %p71, %p72
    %p74 = scmp.ne.s32.totalorder %s66, %s68
    %p75 = scmp.eq.s32.totalorder %s16, 1
    %p76 = por %p74, %p75
    %p77 = scmp.ne.s32.totalorder %s68, %s69
    %p78 = scmp.eq.s32.totalorder %s16, 0
    %p79 = por %p77, %p78
    %p80 = scmp.ne.s32.totalorder %s68, %s69
    %p81 = scmp.eq.s32.totalorder %s17, 1
    %p82 = por %p80, %p81
    %p84 = scmp.ne.s32.totalorder %s69, %s83
    %p85 = scmp.eq.s32.totalorder %s17, 0
    %p86 = por %p84, %p85
    %s88 = sadd.s32 %s87, 1
    %p91 = scmp.eq.s32.totalorder %s11, 1
    %p92 = scmp.ne.s32.totalorder %s87, %s89
    %p93 = scmp.eq.s32.totalorder %s11, 0
    %p94 = por %p92, %p93
    %p95 = scmp.ne.s32.totalorder %s87, %s89
    %p96 = scmp.eq.s32.totalorder %s16, 1
    %p97 = por %p95, %p96
    %p98 = scmp.ne.s32.totalorder %s89, %s90
    %p99 = scmp.eq.s32.totalorder %s16, 0
    %p100 = por %p98, %p99
    %p101 = scmp.ne.s32.totalorder %s89, %s90
    %p102 = scmp.eq.s32.totalorder %s17, 1
    %p103 = por %p101, %p102
    %p105 = scmp.ne.s32.totalorder %s90, %s104
    %p106 = scmp.eq.s32.totalorder %s17, 0
    %p107 = por %p105, %p106
    %s109 = sadd.s32 %s108, 1
    %p112 = scmp.eq.s32.totalorder %s11, 1
    %p113 = scmp.ne.s32.totalorder %s108, %s110
    %p114 = scmp.eq.s32.totalorder %s11, 0
    %p115 = por %p113, %p114
    %p116 = scmp.ne.s32.totalorder %s108, %s110
    %p117 = scmp.eq.s32.totalorder %s16, 1
    %p118 = por %p116, %p117
    %p119 = scmp.ne.s32.totalorder %s110, %s111
    %p120 = scmp.eq.s32.totalorder %s16, 0
    %p121 = por %p119, %p120
    %p122 = scmp.ne.s32.totalorder %s110, %s111
    %p123 = scmp.eq.s32.totalorder %s17, 1
    %p124 = por %p122, %p123
    %p126 = scmp.ne.s32.totalorder %s111, %s125
    %p127 = scmp.eq.s32.totalorder %s17, 0
    %p128 = por %p126, %p127
    %s129 = ssub.s32 %s11, %s18
    %p130 = scmp.eq.s32.totalorder %s129, 0
    %s132 = sadd.s32 %s131, 1
    %s133 = scalar_select %p130, %s131, %s132
    %p136 = pneg %p130
    %p137 = scmp.eq.s32.totalorder %s11, 1
    %p138 = por %p136, %p137
    %p139 = scmp.ne.s32.totalorder %s131, %s134
    %p140 = scmp.eq.s32.totalorder %s11, 0
    %p141 = por %p139, %p140
    %p142 = scmp.ne.s32.totalorder %s131, %s134
    %p143 = scmp.eq.s32.totalorder %s16, 1
    %p144 = por %p142, %p143
    %p145 = scmp.ne.s32.totalorder %s134, %s135
    %p146 = scmp.eq.s32.totalorder %s16, 0
    %p147 = por %p145, %p146
    %p148 = scmp.ne.s32.totalorder %s134, %s135
    %p149 = scmp.eq.s32.totalorder %s17, 1
    %p150 = por %p148, %p149
    %p152 = scmp.ne.s32.totalorder %s135, %s151
    %p153 = scmp.eq.s32.totalorder %s17, 0
    %p154 = por %p152, %p153
    %p155 = scmp.le.s32.totalorder 1, %s11
    %p156 = scmp.lt.s32.totalorder %s11, 3
    %p157 = pnand %p155, %p156
    %p158 = pneg %p157
    // Predicated region
    $region9: #{tpu_custom_call.1} parent=5 // pred_check
      _
    $region10: #{tpu_custom_call.1} parent=5 // pred_check_branch
      %160 = sbr.rel (%p157) target = $region12
    $region11: #{tpu_custom_call.1} parent=5 // pred_region
      %s161 = ssub.s32 %s11, 1
      // Predicated region
      $region13: #{tpu_custom_call.1} parent=11 // pred_check
        %p162 = pneg %p58
      $region14: #{tpu_custom_call.1} parent=11 // pred_check_branch
        %164 = sbr.rel (%p162) target = $region16
      $region15: #{tpu_custom_call.1} parent=11 // pred_region
        _
      $region16: #{tpu_custom_call.1} parent=11 // pred_fallthru
        _
      // Predicated region
      $region17: #{tpu_custom_call.1} parent=11 // pred_check
        %p165 = pneg %p79
      $region18: #{tpu_custom_call.1} parent=11 // pred_check_branch
        %167 = sbr.rel (%p165) target = $region20
      $region19: #{tpu_custom_call.1} parent=11 // pred_region
        _
      $region20: #{tpu_custom_call.1} parent=11 // pred_fallthru
        _
      // Predicated region
      $region21: #{tpu_custom_call.1} parent=11 // pred_check
        %p168 = pneg %p100
      $region22: #{tpu_custom_call.1} parent=11 // pred_check_branch
        %170 = sbr.rel (%p168) target = $region24
      $region23: #{tpu_custom_call.1} parent=11 // pred_region
        _
      $region24: #{tpu_custom_call.1} parent=11 // pred_fallthru
        _
      // Predicated region
      $region25: #{tpu_custom_call.1} parent=11 // pred_check
        %p171 = pneg %p121
      $region26: #{tpu_custom_call.1} parent=11 // pred_check_branch
        %173 = sbr.rel (%p171) target = $region28
      $region27: #{tpu_custom_call.1} parent=11 // pred_region
        _
      $region28: #{tpu_custom_call.1} parent=11 // pred_fallthru
        _
    $region12: #{tpu_custom_call.1} parent=5 // pred_fallthru
      _
    %p174 = scmp.lt.s32.totalorder %s11, 2
    // Predicated region
    $region29: #{tpu_custom_call.1} parent=5 // pred_check
      %p175 = pneg %p174
    $region30: #{tpu_custom_call.1} parent=5 // pred_check_branch
      %177 = sbr.rel (%p175) target = $region32
    $region31: #{tpu_custom_call.1} parent=5 // pred_region
      // Predicated region
      $region33: #{tpu_custom_call.1} parent=31 // pred_check
        %p178 = pneg %p31
      $region34: #{tpu_custom_call.1} parent=31 // pred_check_branch
        %180 = sbr.rel (%p178) target = $region36
      $region35: #{tpu_custom_call.1} parent=31 // pred_region
        %p181 = scmp.lt.s32.totalorder %s11, 1
        %s182 = scalar_select %p181, %s11, 1
        %s183 = smul.addr %s182, 8
        %s184 = scalar_lea.vmem %s0, %s183
      $region36: #{tpu_custom_call.1} parent=31 // pred_fallthru
        _
    $region32: #{tpu_custom_call.1} parent=5 // pred_fallthru
      _
    %p185 = scmp.le.s32.totalorder 1, %s11
    %p186 = scmp.lt.s32.totalorder %s11, 3
    %p187 = pnand %p185, %p186
    %p188 = pneg %p187
    // Predicated region
    $region37: #{tpu_custom_call.1} parent=5 // pred_check
      _
    $region38: #{tpu_custom_call.1} parent=5 // pred_check_branch
      %190 = sbr.rel (%p187) target = $region40
    $region39: #{tpu_custom_call.1} parent=5 // pred_region
      %s191 = ssub.s32 %s11, 1
      %p192 = scmp.lt.s32.totalorder %s16, 1
      %s193 = scalar_select %p192, %s16, 1
      %s194 = smul.addr %s193, 8
      %s195 = scalar_lea.vmem %s0, %s194
      %p196 = pneg %p37
      %p197 = pneg %p34
      %p198 = pneg %p58
      %p199 = pneg %p55
      %p200 = pneg %p79
      %p201 = pneg %p76
      %p202 = pneg %p100
      %p203 = pneg %p97
      %p204 = pneg %p121
      %p205 = pneg %p118
      %p206 = pneg %p147
      %p207 = pneg %p144
      %p208 = scmp.lt.s32.totalorder %s16, 1
      %s209 = scalar_select %p208, %s16, 1
      %s210 = smul.addr %s209, 8
      %s211 = scalar_lea.vmem %s5, %s210
      %p212 = scmp.lt.s32.totalorder %s16, 1
      %s213 = scalar_select %p212, %s16, 1
      %s214 = smul.addr %s213, 8
      %s215 = scalar_lea.vmem %s0, %s214
      %p216 = scmp.lt.s32.totalorder %s16, 1
      %s217 = scalar_select %p216, %s16, 1
      %s218 = smul.addr %s217, 8
      %s219 = scalar_lea.vmem %s5, %s218
      %v220 = vld [vmem:[%s215] sm:$0xff]
      %v221 = vld [vmem:[%s1] sm:$0xff]
      %v222 = vld [vmem:[%s1 + $0x8] sm:$0x3]
      %v223 = vld [vmem:[%s2] sm:$0x1]
      %v225 = vlaneseq
      %v226 = vshrl.u32 %v225, 7
      %v227 = vsub.s32 0, %v226
      %v228 = vrot.slane %v223, %v227
      %vm230 = vcmask 80896
      %v232 = vsel %vm230, %v220, 0
      %vm234 = vcmask 1041408
      %v236 = vsel %vm234, %v222, 0
      %238 = vmatprep.subr.mxu0 0.0
      %v239 = vand.u32 %v221, 4294901760
      %240 = vmatpush1.msra.mxu0 %v239
      %241 = vmatprep.subr.mxu0 0.0
      %v242 = vand.u32 %v236, 4294901760
      %243 = vmatpush1.msra.mxu0 %v242
      %244 = vmatprep.subr.mxu0 0.0
      %245 = vmatpush1.msra.mxu0 0.0
      %246 = vmatprep.subr.mxu0 0.0
      %247 = vmatpush1.msra.mxu0 0.0
      %248 = vmatprep.subr.mxu0 0.0
      %249 = vmatpush1.msra.mxu0 0.0
      %250 = vmatprep.subr.mxu0 0.0
      %251 = vmatpush1.msra.mxu0 0.0
      %252 = vmatprep.subr.mxu0 0.0
      %253 = vmatpush1.msra.mxu0 0.0
      %254 = vmatprep.subr.mxu0 0.0
      %255 = vmatpush1.msra.mxu0 0.0
      %256 = vmatprep.subr.mxu0 0.0
      %257 = vmatpush1.msra.mxu0 0.0
      %258 = vmatprep.subr.mxu0 0.0
      %259 = vmatpush1.msra.mxu0 0.0
      %260 = vmatprep.subr.mxu0 0.0
      %261 = vmatpush1.msra.mxu0 0.0
      %262 = vmatprep.subr.mxu0 0.0
      %263 = vmatpush1.msra.mxu0 0.0
      %264 = vmatprep.subr.mxu0 0.0
      %265 = vmatpush1.msra.mxu0 0.0
      %266 = vmatprep.subr.mxu0 0.0
      %267 = vmatpush1.msra.mxu0 0.0
      %268 = vmatprep.subr.mxu0 0.0
      %269 = vmatpush1.msra.mxu0 0.0
      %270 = vmatprep.subr.mxu0 0.0
      %271 = vmatpush1.msra.mxu0 0.0
      %272 = vmatprep.subr.mxu0 0.0
      %273 = vmatpush1.msra.mxu0 0.0
      %274 = vmatprep.subr.mxu0 0.0
      %275 = vmatpush1.msra.mxu0 0.0
      %276 = vmatprep.subr.mxu0 0.0
      %277 = vmatpush1.msra.mxu0 0.0
      %278 = vmatprep.subr.mxu0 0.0
      %279 = vmatpush1.msra.mxu0 0.0
      %280 = vmatprep.subr.mxu0 0.0
      %281 = vmatpush1.msra.mxu0 0.0
      %282 = vmatprep.subr.mxu0 0.0
      %283 = vmatpush1.msra.mxu0 0.0
      %284 = vmatprep.subr.mxu0 0.0
      %285 = vmatpush1.msra.mxu0 0.0
      %286 = vmatprep.subr.mxu0 0.0
      %287 = vmatpush1.msra.mxu0 0.0
      %288 = vmatprep.subr.mxu0 0.0
      %289 = vmatpush1.msra.mxu0 0.0
      %290 = vmatprep.subr.mxu0 0.0
      %291 = vmatpush1.msra.mxu0 0.0
      %292 = vmatprep.subr.mxu0 0.0
      %293 = vmatpush1.msra.mxu0 0.0
      %294 = vmatprep.subr.mxu0 0.0
      %295 = vmatpush1.msra.mxu0 0.0
      %296 = vmatprep.subr.mxu0 0.0
      %297 = vmatpush1.msra.mxu0 0.0
      %298 = vmatprep.subr.mxu0 0.0
      %299 = vmatpush1.msra.mxu0 0.0
      %300 = vmatprep.subr.mxu0 0.0
      %301 = vmatpush1.msra.mxu0 0.0
      %302 = vmatprep.subr.mxu0 0.0
      %303 = vmatpush1.msra.mxu0 0.0
      %304 = vmatprep.mubr.f32.mxu0 0.0
      %v305 = vand.u32 %v232, 4294901760
      %v306 = vsub.f32 %v232, %v305
      %v307 = vand.u32 %v306, 4294901760
      %v308 = vsub.f32 %v306, %v307
      %v309 = vand.u32 %v308, 4294901760
      %310 = vmatmul.mubr.f32.gmra.mrb[0].mxu0 %v309
      %v311 = vpop.f32.mrb[0].mxu0
      %v312 = vadd.f32 %v228, %v311
      %v313 = vpop.f32.mrb[0].mxu0
      %314 = vdwg.mxu0
      %315 = vmatprep.subr.mxu0 0.0
      %v316 = vand.u32 %v221, 4294901760
      %v317 = vsub.f32 %v221, %v316
      %v318 = vand.u32 %v317, 4294901760
      %v319 = vsub.f32 %v317, %v318
      %v320 = vand.u32 %v319, 4294901760
      %321 = vmatpush1.msra.mxu0 %v320
      %322 = vmatprep.subr.mxu0 0.0
      %v323 = vand.u32 %v236, 4294901760
      %v324 = vsub.f32 %v236, %v323
      %v325 = vand.u32 %v324, 4294901760
      %v326 = vsub.f32 %v324, %v325
      %v327 = vand.u32 %v326, 4294901760
      %328 = vmatpush1.msra.mxu0 %v327
      %329 = vmatprep.subr.mxu0 0.0
      %330 = vmatpush1.msra.mxu0 0.0
      %331 = vmatprep.subr.mxu0 0.0
      %332 = vmatpush1.msra.mxu0 0.0
      %333 = vmatprep.subr.mxu0 0.0
      %334 = vmatpush1.msra.mxu0 0.0
      %335 = vmatprep.subr.mxu0 0.0
      %336 = vmatpush1.msra.mxu0 0.0
      %337 = vmatprep.subr.mxu0 0.0
      %338 = vmatpush1.msra.mxu0 0.0
      %339 = vmatprep.subr.mxu0 0.0
      %340 = vmatpush1.msra.mxu0 0.0
      %341 = vmatprep.subr.mxu0 0.0
      %342 = vmatpush1.msra.mxu0 0.0
      %343 = vmatprep.subr.mxu0 0.0
      %344 = vmatpush1.msra.mxu0 0.0
      %345 = vmatprep.subr.mxu0 0.0
      %346 = vmatpush1.msra.mxu0 0.0
      %347 = vmatprep.subr.mxu0 0.0
      %348 = vmatpush1.msra.mxu0 0.0
      %349 = vmatprep.subr.mxu0 0.0
      %350 = vmatpush1.msra.mxu0 0.0
      %351 = vmatprep.subr.mxu0 0.0
      %352 = vmatpush1.msra.mxu0 0.0
      %353 = vmatprep.subr.mxu0 0.0
      %354 = vmatpush1.msra.mxu0 0.0
      %355 = vmatprep.subr.mxu0 0.0
      %356 = vmatpush1.msra.mxu0 0.0
      %357 = vmatprep.subr.mxu0 0.0
      %358 = vmatpush1.msra.mxu0 0.0
      %359 = vmatprep.subr.mxu0 0.0
      %360 = vmatpush1.msra.mxu0 0.0
      %361 = vmatprep.subr.mxu0 0.0
      %362 = vmatpush1.msra.mxu0 0.0
      %363 = vmatprep.subr.mxu0 0.0
      %364 = vmatpush1.msra.mxu0 0.0
      %365 = vmatprep.subr.mxu0 0.0
      %366 = vmatpush1.msra.mxu0 0.0
      %367 = vmatprep.subr.mxu0 0.0
      %368 = vmatpush1.msra.mxu0 0.0
      %369 = vmatprep.subr.mxu0 0.0
      %370 = vmatpush1.msra.mxu0 0.0
      %371 = vmatprep.subr.mxu0 0.0
      %372 = vmatpush1.msra.mxu0 0.0
      %373 = vmatprep.subr.mxu0 0.0
      %374 = vmatpush1.msra.mxu0 0.0
      %375 = vmatprep.subr.mxu0 0.0
      %376 = vmatpush1.msra.mxu0 0.0
      %377 = vmatprep.subr.mxu0 0.0
      %378 = vmatpush1.msra.mxu0 0.0
      %379 = vmatprep.subr.mxu0 0.0
      %380 = vmatpush1.msra.mxu0 0.0
      %381 = vmatprep.subr.mxu0 0.0
      %382 = vmatpush1.msra.mxu0 0.0
      %383 = vmatprep.subr.mxu0 0.0
      %384 = vmatpush1.msra.mxu0 0.0
      %385 = vmatprep.subr.mxu0 0.0
      %386 = vmatpush1.msra.mxu0 0.0
      %387 = vmatprep.subr.mxu0 0.0
      %388 = vmatpush1.msra.mxu0 0.0
      %389 = vmatprep.mubr.f32.mxu0 0.0
      %v390 = vand.u32 %v232, 4294901760
      %391 = vmatmul.mubr.f32.gmra.mrb[0].mxu0 %v390
      %v392 = vpop.f32.mrb[0].mxu0
      %v393 = vadd.f32 %v312, %v392
      %v394 = vpop.f32.mrb[0].mxu0
      %395 = vdwg.mxu0
      %396 = vmatprep.subr.mxu0 0.0
      %v397 = vand.u32 %v221, 4294901760
      %v398 = vsub.f32 %v221, %v397
      %399 = vmatpush1.msra.mxu0 %v398
      %400 = vmatprep.subr.mxu0 0.0
      %v401 = vand.u32 %v236, 4294901760
      %v402 = vsub.f32 %v236, %v401
      %403 = vmatpush1.msra.mxu0 %v402
      %404 = vmatprep.subr.mxu0 0.0
      %405 = vmatpush1.msra.mxu0 0.0
      %406 = vmatprep.subr.mxu0 0.0
      %407 = vmatpush1.msra.mxu0 0.0
      %408 = vmatprep.subr.mxu0 0.0
      %409 = vmatpush1.msra.mxu0 0.0
      %410 = vmatprep.subr.mxu0 0.0
      %411 = vmatpush1.msra.mxu0 0.0
      %412 = vmatprep.subr.mxu0 0.0
      %413 = vmatpush1.msra.mxu0 0.0
      %414 = vmatprep.subr.mxu0 0.0
      %415 = vmatpush1.msra.mxu0 0.0
      %416 = vmatprep.subr.mxu0 0.0
      %417 = vmatpush1.msra.mxu0 0.0
      %418 = vmatprep.subr.mxu0 0.0
      %419 = vmatpush1.msra.mxu0 0.0
      %420 = vmatprep.subr.mxu0 0.0
      %421 = vmatpush1.msra.mxu0 0.0
      %422 = vmatprep.subr.mxu0 0.0
      %423 = vmatpush1.msra.mxu0 0.0
      %424 = vmatprep.subr.mxu0 0.0
      %425 = vmatpush1.msra.mxu0 0.0
      %426 = vmatprep.subr.mxu0 0.0
      %427 = vmatpush1.msra.mxu0 0.0
      %428 = vmatprep.subr.mxu0 0.0
      %429 = vmatpush1.msra.mxu0 0.0
      %430 = vmatprep.subr.mxu0 0.0
      %431 = vmatpush1.msra.mxu0 0.0
      %432 = vmatprep.subr.mxu0 0.0
      %433 = vmatpush1.msra.mxu0 0.0
      %434 = vmatprep.subr.mxu0 0.0
      %435 = vmatpush1.msra.mxu0 0.0
      %436 = vmatprep.subr.mxu0 0.0
      %437 = vmatpush1.msra.mxu0 0.0
      %438 = vmatprep.subr.mxu0 0.0
      %439 = vmatpush1.msra.mxu0 0.0
      %440 = vmatprep.subr.mxu0 0.0
      %441 = vmatpush1.msra.mxu0 0.0
      %442 = vmatprep.subr.mxu0 0.0
      %443 = vmatpush1.msra.mxu0 0.0
      %444 = vmatprep.subr.mxu0 0.0
      %445 = vmatpush1.msra.mxu0 0.0
      %446 = vmatprep.subr.mxu0 0.0
      %447 = vmatpush1.msra.mxu0 0.0
      %448 = vmatprep.subr.mxu0 0.0
      %449 = vmatpush1.msra.mxu0 0.0
      %450 = vmatprep.subr.mxu0 0.0
      %451 = vmatpush1.msra.mxu0 0.0
      %452 = vmatprep.subr.mxu0 0.0
      %453 = vmatpush1.msra.mxu0 0.0
      %454 = vmatprep.subr.mxu0 0.0
      %455 = vmatpush1.msra.mxu0 0.0
      %456 = vmatprep.subr.mxu0 0.0
      %457 = vmatpush1.msra.mxu0 0.0
      %458 = vmatprep.subr.mxu0 0.0
      %459 = vmatpush1.msra.mxu0 0.0
      %460 = vmatprep.subr.mxu0 0.0
      %461 = vmatpush1.msra.mxu0 0.0
      %462 = vmatprep.subr.mxu0 0.0
      %463 = vmatpush1.msra.mxu0 0.0
      %464 = vmatprep.mubr.f32.mxu0 0.0
      %v465 = vand.u32 %v232, 4294901760
      %v466 = vsub.f32 %v232, %v465
      %467 = vmatmul.mubr.f32.gmra.mrb[0].mxu0 %v466
      %v468 = vpop.f32.mrb[0].mxu0
      %v469 = vadd.f32 %v393, %v468
      %v470 = vpop.f32.mrb[0].mxu0
      %471 = vdwg.mxu0
      %472 = vmatprep.subr.mxu0 0.0
      %v473 = vand.u32 %v221, 4294901760
      %474 = vmatpush1.msra.mxu0 %v473
      %475 = vmatprep.subr.mxu0 0.0
      %v476 = vand.u32 %v236, 4294901760
      %477 = vmatpush1.msra.mxu0 %v476
      %478 = vmatprep.subr.mxu0 0.0
      %479 = vmatpush1.msra.mxu0 0.0
      %480 = vmatprep.subr.mxu0 0.0
      %481 = vmatpush1.msra.mxu0 0.0
      %482 = vmatprep.subr.mxu0 0.0
      %483 = vmatpush1.msra.mxu0 0.0
      %484 = vmatprep.subr.mxu0 0.0
      %485 = vmatpush1.msra.mxu0 0.0
      %486 = vmatprep.subr.mxu0 0.0
      %487 = vmatpush1.msra.mxu0 0.0
      %488 = vmatprep.subr.mxu0 0.0
      %489 = vmatpush1.msra.mxu0 0.0
      %490 = vmatprep.subr.mxu0 0.0
      %491 = vmatpush1.msra.mxu0 0.0
      %492 = vmatprep.subr.mxu0 0.0
      %493 = vmatpush1.msra.mxu0 0.0
      %494 = vmatprep.subr.mxu0 0.0
      %495 = vmatpush1.msra.mxu0 0.0
      %496 = vmatprep.subr.mxu0 0.0
      %497 = vmatpush1.msra.mxu0 0.0
      %498 = vmatprep.subr.mxu0 0.0
      %499 = vmatpush1.msra.mxu0 0.0
      %500 = vmatprep.subr.mxu0 0.0
      %501 = vmatpush1.msra.mxu0 0.0
      %502 = vmatprep.subr.mxu0 0.0
      %503 = vmatpush1.msra.mxu0 0.0
      %504 = vmatprep.subr.mxu0 0.0
      %505 = vmatpush1.msra.mxu0 0.0
      %506 = vmatprep.subr.mxu0 0.0
      %507 = vmatpush1.msra.mxu0 0.0
      %508 = vmatprep.subr.mxu0 0.0
      %509 = vmatpush1.msra.mxu0 0.0
      %510 = vmatprep.subr.mxu0 0.0
      %511 = vmatpush1.msra.mxu0 0.0
      %512 = vmatprep.subr.mxu0 0.0
      %513 = vmatpush1.msra.mxu0 0.0
      %514 = vmatprep.subr.mxu0 0.0
      %515 = vmatpush1.msra.mxu0 0.0
      %516 = vmatprep.subr.mxu0 0.0
      %517 = vmatpush1.msra.mxu0 0.0
      %518 = vmatprep.subr.mxu0 0.0
      %519 = vmatpush1.msra.mxu0 0.0
      %520 = vmatprep.subr.mxu0 0.0
      %521 = vmatpush1.msra.mxu0 0.0
      %522 = vmatprep.subr.mxu0 0.0
      %523 = vmatpush1.msra.mxu0 0.0
      %524 = vmatprep.subr.mxu0 0.0
      %525 = vmatpush1.msra.mxu0 0.0
      %526 = vmatprep.subr.mxu0 0.0
      %527 = vmatpush1.msra.mxu0 0.0
      %528 = vmatprep.subr.mxu0 0.0
      %529 = vmatpush1.msra.mxu0 0.0
      %530 = vmatprep.subr.mxu0 0.0
      %531 = vmatpush1.msra.mxu0 0.0
      %532 = vmatprep.subr.mxu0 0.0
      %533 = vmatpush1.msra.mxu0 0.0
      %534 = vmatprep.subr.mxu0 0.0
      %535 = vmatpush1.msra.mxu0 0.0
      %536 = vmatprep.subr.mxu0 0.0
      %537 = vmatpush1.msra.mxu0 0.0
      %538 = vmatprep.mubr.f32.mxu0 0.0
      %v539 = vand.u32 %v232, 4294901760
      %v540 = vsub.f32 %v232, %v539
      %v541 = vand.u32 %v540, 4294901760
      %542 = vmatmul.mubr.f32.gmra.mrb[0].mxu0 %v541
      %v543 = vpop.f32.mrb[0].mxu0
      %v544 = vadd.f32 %v469, %v543
      %v545 = vpop.f32.mrb[0].mxu0
      %546 = vdwg.mxu0
      %547 = vmatprep.subr.mxu0 0.0
      %v548 = vand.u32 %v221, 4294901760
      %v549 = vsub.f32 %v221, %v548
      %v550 = vand.u32 %v549, 4294901760
      %551 = vmatpush1.msra.mxu0 %v550
      %552 = vmatprep.subr.mxu0 0.0
      %v553 = vand.u32 %v236, 4294901760
      %v554 = vsub.f32 %v236, %v553
      %v555 = vand.u32 %v554, 4294901760
      %556 = vmatpush1.msra.mxu0 %v555
      %557 = vmatprep.subr.mxu0 0.0
      %558 = vmatpush1.msra.mxu0 0.0
      %559 = vmatprep.subr.mxu0 0.0
      %560 = vmatpush1.msra.mxu0 0.0
      %561 = vmatprep.subr.mxu0 0.0
      %562 = vmatpush1.msra.mxu0 0.0
      %563 = vmatprep.subr.mxu0 0.0
      %564 = vmatpush1.msra.mxu0 0.0
      %565 = vmatprep.subr.mxu0 0.0
      %566 = vmatpush1.msra.mxu0 0.0
      %567 = vmatprep.subr.mxu0 0.0
      %568 = vmatpush1.msra.mxu0 0.0
      %569 = vmatprep.subr.mxu0 0.0
      %570 = vmatpush1.msra.mxu0 0.0
      %571 = vmatprep.subr.mxu0 0.0
      %572 = vmatpush1.msra.mxu0 0.0
      %573 = vmatprep.subr.mxu0 0.0
      %574 = vmatpush1.msra.mxu0 0.0
      %575 = vmatprep.subr.mxu0 0.0
      %576 = vmatpush1.msra.mxu0 0.0
      %577 = vmatprep.subr.mxu0 0.0
      %578 = vmatpush1.msra.mxu0 0.0
      %579 = vmatprep.subr.mxu0 0.0
      %580 = vmatpush1.msra.mxu0 0.0
      %581 = vmatprep.subr.mxu0 0.0
      %582 = vmatpush1.msra.mxu0 0.0
      %583 = vmatprep.subr.mxu0 0.0
      %584 = vmatpush1.msra.mxu0 0.0
      %585 = vmatprep.subr.mxu0 0.0
      %586 = vmatpush1.msra.mxu0 0.0
      %587 = vmatprep.subr.mxu0 0.0
      %588 = vmatpush1.msra.mxu0 0.0
      %589 = vmatprep.subr.mxu0 0.0
      %590 = vmatpush1.msra.mxu0 0.0
      %591 = vmatprep.subr.mxu0 0.0
      %592 = vmatpush1.msra.mxu0 0.0
      %593 = vmatprep.subr.mxu0 0.0
      %594 = vmatpush1.msra.mxu0 0.0
      %595 = vmatprep.subr.mxu0 0.0
      %596 = vmatpush1.msra.mxu0 0.0
      %597 = vmatprep.subr.mxu0 0.0
      %598 = vmatpush1.msra.mxu0 0.0
      %599 = vmatprep.subr.mxu0 0.0
      %600 = vmatpush1.msra.mxu0 0.0
      %601 = vmatprep.subr.mxu0 0.0
      %602 = vmatpush1.msra.mxu0 0.0
      %603 = vmatprep.subr.mxu0 0.0
      %604 = vmatpush1.msra.mxu0 0.0
      %605 = vmatprep.subr.mxu0 0.0
      %606 = vmatpush1.msra.mxu0 0.0
      %607 = vmatprep.subr.mxu0 0.0
      %608 = vmatpush1.msra.mxu0 0.0
      %609 = vmatprep.subr.mxu0 0.0
      %610 = vmatpush1.msra.mxu0 0.0
      %611 = vmatprep.subr.mxu0 0.0
      %612 = vmatpush1.msra.mxu0 0.0
      %613 = vmatprep.subr.mxu0 0.0
      %614 = vmatpush1.msra.mxu0 0.0
      %615 = vmatprep.subr.mxu0 0.0
      %616 = vmatpush1.msra.mxu0 0.0
      %617 = vmatprep.mubr.f32.mxu0 0.0
      %v618 = vand.u32 %v232, 4294901760
      %619 = vmatmul.mubr.f32.gmra.mrb[0].mxu0 %v618
      %v620 = vpop.f32.mrb[0].mxu0
      %v621 = vadd.f32 %v544, %v620
      %v622 = vpop.f32.mrb[0].mxu0
      %623 = vdwg.mxu0
      %624 = vmatprep.subr.mxu0 0.0
      %v625 = vand.u32 %v221, 4294901760
      %626 = vmatpush1.msra.mxu0 %v625
      %627 = vmatprep.subr.mxu0 0.0
      %v628 = vand.u32 %v236, 4294901760
      %629 = vmatpush1.msra.mxu0 %v628
      %630 = vmatprep.subr.mxu0 0.0
      %631 = vmatpush1.msra.mxu0 0.0
      %632 = vmatprep.subr.mxu0 0.0
      %633 = vmatpush1.msra.mxu0 0.0
      %634 = vmatprep.subr.mxu0 0.0
      %635 = vmatpush1.msra.mxu0 0.0
      %636 = vmatprep.subr.mxu0 0.0
      %637 = vmatpush1.msra.mxu0 0.0
      %638 = vmatprep.subr.mxu0 0.0
      %639 = vmatpush1.msra.mxu0 0.0
      %640 = vmatprep.subr.mxu0 0.0
      %641 = vmatpush1.msra.mxu0 0.0
      %642 = vmatprep.subr.mxu0 0.0
      %643 = vmatpush1.msra.mxu0 0.0
      %644 = vmatprep.subr.mxu0 0.0
      %645 = vmatpush1.msra.mxu0 0.0
      %646 = vmatprep.subr.mxu0 0.0
      %647 = vmatpush1.msra.mxu0 0.0
      %648 = vmatprep.subr.mxu0 0.0
      %649 = vmatpush1.msra.mxu0 0.0
      %650 = vmatprep.subr.mxu0 0.0
      %651 = vmatpush1.msra.mxu0 0.0
      %652 = vmatprep.subr.mxu0 0.0
      %653 = vmatpush1.msra.mxu0 0.0
      %654 = vmatprep.subr.mxu0 0.0
      %655 = vmatpush1.msra.mxu0 0.0
      %656 = vmatprep.subr.mxu0 0.0
      %657 = vmatpush1.msra.mxu0 0.0
      %658 = vmatprep.subr.mxu0 0.0
      %659 = vmatpush1.msra.mxu0 0.0
      %660 = vmatprep.subr.mxu0 0.0
      %661 = vmatpush1.msra.mxu0 0.0
      %662 = vmatprep.subr.mxu0 0.0
      %663 = vmatpush1.msra.mxu0 0.0
      %664 = vmatprep.subr.mxu0 0.0
      %665 = vmatpush1.msra.mxu0 0.0
      %666 = vmatprep.subr.mxu0 0.0
      %667 = vmatpush1.msra.mxu0 0.0
      %668 = vmatprep.subr.mxu0 0.0
      %669 = vmatpush1.msra.mxu0 0.0
      %670 = vmatprep.subr.mxu0 0.0
      %671 = vmatpush1.msra.mxu0 0.0
      %672 = vmatprep.subr.mxu0 0.0
      %673 = vmatpush1.msra.mxu0 0.0
      %674 = vmatprep.subr.mxu0 0.0
      %675 = vmatpush1.msra.mxu0 0.0
      %676 = vmatprep.subr.mxu0 0.0
      %677 = vmatpush1.msra.mxu0 0.0
      %678 = vmatprep.subr.mxu0 0.0
      %679 = vmatpush1.msra.mxu0 0.0
      %680 = vmatprep.subr.mxu0 0.0
      %681 = vmatpush1.msra.mxu0 0.0
      %682 = vmatprep.subr.mxu0 0.0
      %683 = vmatpush1.msra.mxu0 0.0
      %684 = vmatprep.subr.mxu0 0.0
      %685 = vmatpush1.msra.mxu0 0.0
      %686 = vmatprep.subr.mxu0 0.0
      %687 = vmatpush1.msra.mxu0 0.0
      %688 = vmatprep.subr.mxu0 0.0
      %689 = vmatpush1.msra.mxu0 0.0
      %690 = vmatprep.mubr.f32.mxu0 0.0
      %v691 = vand.u32 %v232, 4294901760
      %692 = vmatmul.mubr.f32.gmra.mrb[0].mxu0 %v691
      %v693 = vpop.f32.mrb[0].mxu0
      %v694 = vadd.f32 %v621, %v693
      %v695 = vpop.f32.mrb[0].mxu0
      %696 = vdwg.mxu0
      %v697 = vmax.f32 %v694, 0.0
      %v698 = vld [vmem:[%s3] sm:$0xff]
      %v699 = vld [vmem:[%s3 + $0x8] sm:$0xff]
      %v700 = vld [vmem:[%s3 + $0x10] sm:$0xff]
      %v701 = vld [vmem:[%s3 + $0x18] sm:$0xff]
      %v702 = vld [vmem:[%s3 + $0x20] sm:$0xff]
      %v703 = vld [vmem:[%s3 + $0x28] sm:$0xff]
      %v704 = vld [vmem:[%s3 + $0x30] sm:$0xff]
      %v705 = vld [vmem:[%s3 + $0x38] sm:$0xff]
      %v706 = vld [vmem:[%s4] sm:$0x1]
      %v708 = vlaneseq
      %v709 = vshrl.u32 %v708, 7
      %v710 = vsub.s32 0, %v709
      %v711 = vrot.slane %v706, %v710
      %vm713 = vcmask 523264
      %v715 = vsel %vm713, %v697, 0
      %717 = vmatprep.subr.mxu0 0.0
      %v718 = vand.u32 %v698, 4294901760
      %719 = vmatpush1.msra.mxu0 %v718
      %720 = vmatprep.subr.mxu0 0.0
      %v721 = vand.u32 %v699, 4294901760
      %722 = vmatpush1.msra.mxu0 %v721
      %723 = vmatprep.subr.mxu0 0.0
      %v724 = vand.u32 %v700, 4294901760
      %725 = vmatpush1.msra.mxu0 %v724
      %726 = vmatprep.subr.mxu0 0.0
      %v727 = vand.u32 %v701, 4294901760
      %728 = vmatpush1.msra.mxu0 %v727
      %729 = vmatprep.subr.mxu0 0.0
      %v730 = vand.u32 %v702, 4294901760
      %731 = vmatpush1.msra.mxu0 %v730
      %732 = vmatprep.subr.mxu0 0.0
      %v733 = vand.u32 %v703, 4294901760
      %734 = vmatpush1.msra.mxu0 %v733
      %735 = vmatprep.subr.mxu0 0.0
      %v736 = vand.u32 %v704, 4294901760
      %737 = vmatpush1.msra.mxu0 %v736
      %738 = vmatprep.subr.mxu0 0.0
      %v739 = vand.u32 %v705, 4294901760
      %740 = vmatpush1.msra.mxu0 %v739
      %741 = vmatprep.subr.mxu0 0.0
      %742 = vmatpush1.msra.mxu0 0.0
      %743 = vmatprep.subr.mxu0 0.0
      %744 = vmatpush1.msra.mxu0 0.0
      %745 = vmatprep.subr.mxu0 0.0
      %746 = vmatpush1.msra.mxu0 0.0
      %747 = vmatprep.subr.mxu0 0.0
      %748 = vmatpush1.msra.mxu0 0.0
      %749 = vmatprep.subr.mxu0 0.0
      %750 = vmatpush1.msra.mxu0 0.0
      %751 = vmatprep.subr.mxu0 0.0
      %752 = vmatpush1.msra.mxu0 0.0
      %753 = vmatprep.subr.mxu0 0.0
      %754 = vmatpush1.msra.mxu0 0.0
      %755 = vmatprep.subr.mxu0 0.0
      %756 = vmatpush1.msra.mxu0 0.0
      %757 = vmatprep.subr.mxu0 0.0
      %758 = vmatpush1.msra.mxu0 0.0
      %759 = vmatprep.subr.mxu0 0.0
      %760 = vmatpush1.msra.mxu0 0.0
      %761 = vmatprep.subr.mxu0 0.0
      %762 = vmatpush1.msra.mxu0 0.0
      %763 = vmatprep.subr.mxu0 0.0
      %764 = vmatpush1.msra.mxu0 0.0
      %765 = vmatprep.subr.mxu0 0.0
      %766 = vmatpush1.msra.mxu0 0.0
      %767 = vmatprep.subr.mxu0 0.0
      %768 = vmatpush1.msra.mxu0 0.0
      %769 = vmatprep.subr.mxu0 0.0
      %770 = vmatpush1.msra.mxu0 0.0
      %771 = vmatprep.subr.mxu0 0.0
      %772 = vmatpush1.msra.mxu0 0.0
      %773 = vmatprep.subr.mxu0 0.0
      %774 = vmatpush1.msra.mxu0 0.0
      %775 = vmatprep.subr.mxu0 0.0
      %776 = vmatpush1.msra.mxu0 0.0
      %777 = vmatprep.subr.mxu0 0.0
      %778 = vmatpush1.msra.mxu0 0.0
      %779 = vmatprep.subr.mxu0 0.0
      %780 = vmatpush1.msra.mxu0 0.0
      %781 = vmatprep.subr.mxu0 0.0
      %782 = vmatpush1.msra.mxu0 0.0
      %783 = vmatprep.subr.mxu0 0.0
      %784 = vmatpush1.msra.mxu0 0.0
      %785 = vmatprep.subr.mxu0 0.0
      %786 = vmatpush1.msra.mxu0 0.0
      %787 = vmatprep.subr.mxu0 0.0
      %788 = vmatpush1.msra.mxu0 0.0
      %789 = vmatprep.mubr.f32.mxu0 0.0
      %v790 = vand.u32 %v715, 4294901760
      %v791 = vsub.f32 %v715, %v790
      %v792 = vand.u32 %v791, 4294901760
      %v793 = vsub.f32 %v791, %v792
      %v794 = vand.u32 %v793, 4294901760
      %795 = vmatmul.mubr.f32.gmra.mrb[0].mxu0 %v794
      %v796 = vpop.f32.mrb[0].mxu0
      %v797 = vadd.f32 %v711, %v796
      %v798 = vpop.f32.mrb[0].mxu0
      %799 = vdwg.mxu0
      %800 = vmatprep.subr.mxu0 0.0
      %v801 = vand.u32 %v698, 4294901760
      %v802 = vsub.f32 %v698, %v801
      %v803 = vand.u32 %v802, 4294901760
      %v804 = vsub.f32 %v802, %v803
      %v805 = vand.u32 %v804, 4294901760
      %806 = vmatpush1.msra.mxu0 %v805
      %807 = vmatprep.subr.mxu0 0.0
      %v808 = vand.u32 %v699, 4294901760
      %v809 = vsub.f32 %v699, %v808
      %v810 = vand.u32 %v809, 4294901760
      %v811 = vsub.f32 %v809, %v810
      %v812 = vand.u32 %v811, 4294901760
      %813 = vmatpush1.msra.mxu0 %v812
      %814 = vmatprep.subr.mxu0 0.0
      %v815 = vand.u32 %v700, 4294901760
      %v816 = vsub.f32 %v700, %v815
      %v817 = vand.u32 %v816, 4294901760
      %v818 = vsub.f32 %v816, %v817
      %v819 = vand.u32 %v818, 4294901760
      %820 = vmatpush1.msra.mxu0 %v819
      %821 = vmatprep.subr.mxu0 0.0
      %v822 = vand.u32 %v701, 4294901760
      %v823 = vsub.f32 %v701, %v822
      %v824 = vand.u32 %v823, 4294901760
      %v825 = vsub.f32 %v823, %v824
      %v826 = vand.u32 %v825, 4294901760
      %827 = vmatpush1.msra.mxu0 %v826
      %828 = vmatprep.subr.mxu0 0.0
      %v829 = vand.u32 %v702, 4294901760
      %v830 = vsub.f32 %v702, %v829
      %v831 = vand.u32 %v830, 4294901760
      %v832 = vsub.f32 %v830, %v831
      %v833 = vand.u32 %v832, 4294901760
      %834 = vmatpush1.msra.mxu0 %v833
      %835 = vmatprep.subr.mxu0 0.0
      %v836 = vand.u32 %v703, 4294901760
      %v837 = vsub.f32 %v703, %v836
      %v838 = vand.u32 %v837, 4294901760
      %v839 = vsub.f32 %v837, %v838
      %v840 = vand.u32 %v839, 4294901760
      %841 = vmatpush1.msra.mxu0 %v840
      %842 = vmatprep.subr.mxu0 0.0
      %v843 = vand.u32 %v704, 4294901760
      %v844 = vsub.f32 %v704, %v843
      %v845 = vand.u32 %v844, 4294901760
      %v846 = vsub.f32 %v844, %v845
      %v847 = vand.u32 %v846, 4294901760
      %848 = vmatpush1.msra.mxu0 %v847
      %849 = vmatprep.subr.mxu0 0.0
      %v850 = vand.u32 %v705, 4294901760
      %v851 = vsub.f32 %v705, %v850
      %v852 = vand.u32 %v851, 4294901760
      %v853 = vsub.f32 %v851, %v852
      %v854 = vand.u32 %v853, 4294901760
      %855 = vmatpush1.msra.mxu0 %v854
      %856 = vmatprep.subr.mxu0 0.0
      %857 = vmatpush1.msra.mxu0 0.0
      %858 = vmatprep.subr.mxu0 0.0
      %859 = vmatpush1.msra.mxu0 0.0
      %860 = vmatprep.subr.mxu0 0.0
      %861 = vmatpush1.msra.mxu0 0.0
      %862 = vmatprep.subr.mxu0 0.0
      %863 = vmatpush1.msra.mxu0 0.0
      %864 = vmatprep.subr.mxu0 0.0
      %865 = vmatpush1.msra.mxu0 0.0
      %866 = vmatprep.subr.mxu0 0.0
      %867 = vmatpush1.msra.mxu0 0.0
      %868 = vmatprep.subr.mxu0 0.0
      %869 = vmatpush1.msra.mxu0 0.0
      %870 = vmatprep.subr.mxu0 0.0
      %871 = vmatpush1.msra.mxu0 0.0
      %872 = vmatprep.subr.mxu0 0.0
      %873 = vmatpush1.msra.mxu0 0.0
      %874 = vmatprep.subr.mxu0 0.0
      %875 = vmatpush1.msra.mxu0 0.0
      %876 = vmatprep.subr.mxu0 0.0
      %877 = vmatpush1.msra.mxu0 0.0
      %878 = vmatprep.subr.mxu0 0.0
      %879 = vmatpush1.msra.mxu0 0.0
      %880 = vmatprep.subr.mxu0 0.0
      %881 = vmatpush1.msra.mxu0 0.0
      %882 = vmatprep.subr.mxu0 0.0
      %883 = vmatpush1.msra.mxu0 0.0
      %884 = vmatprep.subr.mxu0 0.0
      %885 = vmatpush1.msra.mxu0 0.0
      %886 = vmatprep.subr.mxu0 0.0
      %887 = vmatpush1.msra.mxu0 0.0
      %888 = vmatprep.subr.mxu0 0.0
      %889 = vmatpush1.msra.mxu0 0.0
      %890 = vmatprep.subr.mxu0 0.0
      %891 = vmatpush1.msra.mxu0 0.0
      %892 = vmatprep.subr.mxu0 0.0
      %893 = vmatpush1.msra.mxu0 0.0
      %894 = vmatprep.subr.mxu0 0.0
      %895 = vmatpush1.msra.mxu0 0.0
      %896 = vmatprep.subr.mxu0 0.0
      %897 = vmatpush1.msra.mxu0 0.0
      %898 = vmatprep.subr.mxu0 0.0
      %899 = vmatpush1.msra.mxu0 0.0
      %900 = vmatprep.subr.mxu0 0.0
      %901 = vmatpush1.msra.mxu0 0.0
      %902 = vmatprep.subr.mxu0 0.0
      %903 = vmatpush1.msra.mxu0 0.0
      %904 = vmatprep.mubr.f32.mxu0 0.0
      %v905 = vand.u32 %v715, 4294901760
      %906 = vmatmul.mubr.f32.gmra.mrb[0].mxu0 %v905
      %v907 = vpop.f32.mrb[0].mxu0
      %v908 = vadd.f32 %v797, %v907
      %v909 = vpop.f32.mrb[0].mxu0
      %910 = vdwg.mxu0
      %911 = vmatprep.subr.mxu0 0.0
      %v912 = vand.u32 %v698, 4294901760
      %v913 = vsub.f32 %v698, %v912
      %914 = vmatpush1.msra.mxu0 %v913
      %915 = vmatprep.subr.mxu0 0.0
      %v916 = vand.u32 %v699, 4294901760
      %v917 = vsub.f32 %v699, %v916
      %918 = vmatpush1.msra.mxu0 %v917
      %919 = vmatprep.subr.mxu0 0.0
      %v920 = vand.u32 %v700, 4294901760
      %v921 = vsub.f32 %v700, %v920
      %922 = vmatpush1.msra.mxu0 %v921
      %923 = vmatprep.subr.mxu0 0.0
      %v924 = vand.u32 %v701, 4294901760
      %v925 = vsub.f32 %v701, %v924
      %926 = vmatpush1.msra.mxu0 %v925
      %927 = vmatprep.subr.mxu0 0.0
      %v928 = vand.u32 %v702, 4294901760
      %v929 = vsub.f32 %v702, %v928
      %930 = vmatpush1.msra.mxu0 %v929
      %931 = vmatprep.subr.mxu0 0.0
      %v932 = vand.u32 %v703, 4294901760
      %v933 = vsub.f32 %v703, %v932
      %934 = vmatpush1.msra.mxu0 %v933
      %935 = vmatprep.subr.mxu0 0.0
      %v936 = vand.u32 %v704, 4294901760
      %v937 = vsub.f32 %v704, %v936
      %938 = vmatpush1.msra.mxu0 %v937
      %939 = vmatprep.subr.mxu0 0.0
      %v940 = vand.u32 %v705, 4294901760
      %v941 = vsub.f32 %v705, %v940
      %942 = vmatpush1.msra.mxu0 %v941
      %943 = vmatprep.subr.mxu0 0.0
      %944 = vmatpush1.msra.mxu0 0.0
      %945 = vmatprep.subr.mxu0 0.0
      %946 = vmatpush1.msra.mxu0 0.0
      %947 = vmatprep.subr.mxu0 0.0
      %948 = vmatpush1.msra.mxu0 0.0
      %949 = vmatprep.subr.mxu0 0.0
      %950 = vmatpush1.msra.mxu0 0.0
      %951 = vmatprep.subr.mxu0 0.0
      %952 = vmatpush1.msra.mxu0 0.0
      %953 = vmatprep.subr.mxu0 0.0
      %954 = vmatpush1.msra.mxu0 0.0
      %955 = vmatprep.subr.mxu0 0.0
      %956 = vmatpush1.msra.mxu0 0.0
      %957 = vmatprep.subr.mxu0 0.0
      %958 = vmatpush1.msra.mxu0 0.0
      %959 = vmatprep.subr.mxu0 0.0
      %960 = vmatpush1.msra.mxu0 0.0
      %961 = vmatprep.subr.mxu0 0.0
      %962 = vmatpush1.msra.mxu0 0.0
      %963 = vmatprep.subr.mxu0 0.0
      %964 = vmatpush1.msra.mxu0 0.0
      %965 = vmatprep.subr.mxu0 0.0
      %966 = vmatpush1.msra.mxu0 0.0
      %967 = vmatprep.subr.mxu0 0.0
      %968 = vmatpush1.msra.mxu0 0.0
      %969 = vmatprep.subr.mxu0 0.0
      %970 = vmatpush1.msra.mxu0 0.0
      %971 = vmatprep.subr.mxu0 0.0
      %972 = vmatpush1.msra.mxu0 0.0
      %973 = vmatprep.subr.mxu0 0.0
      %974 = vmatpush1.msra.mxu0 0.0
      %975 = vmatprep.subr.mxu0 0.0
      %976 = vmatpush1.msra.mxu0 0.0
      %977 = vmatprep.subr.mxu0 0.0
      %978 = vmatpush1.msra.mxu0 0.0
      %979 = vmatprep.subr.mxu0 0.0
      %980 = vmatpush1.msra.mxu0 0.0
      %981 = vmatprep.subr.mxu0 0.0
      %982 = vmatpush1.msra.mxu0 0.0
      %983 = vmatprep.subr.mxu0 0.0
      %984 = vmatpush1.msra.mxu0 0.0
      %985 = vmatprep.subr.mxu0 0.0
      %986 = vmatpush1.msra.mxu0 0.0
      %987 = vmatprep.subr.mxu0 0.0
      %988 = vmatpush1.msra.mxu0 0.0
      %989 = vmatprep.subr.mxu0 0.0
      %990 = vmatpush1.msra.mxu0 0.0
      %991 = vmatprep.mubr.f32.mxu0 0.0
      %v992 = vand.u32 %v715, 4294901760
      %v993 = vsub.f32 %v715, %v992
      %994 = vmatmul.mubr.f32.gmra.mrb[0].mxu0 %v993
      %v995 = vpop.f32.mrb[0].mxu0
      %v996 = vadd.f32 %v908, %v995
      %v997 = vpop.f32.mrb[0].mxu0
      %998 = vdwg.mxu0
      %999 = vmatprep.subr.mxu0 0.0
      %v1000 = vand.u32 %v698, 4294901760
      %1001 = vmatpush1.msra.mxu0 %v1000
      %1002 = vmatprep.subr.mxu0 0.0
      %v1003 = vand.u32 %v699, 4294901760
      %1004 = vmatpush1.msra.mxu0 %v1003
      %1005 = vmatprep.subr.mxu0 0.0
      %v1006 = vand.u32 %v700, 4294901760
      %1007 = vmatpush1.msra.mxu0 %v1006
      %1008 = vmatprep.subr.mxu0 0.0
      %v1009 = vand.u32 %v701, 4294901760
      %1010 = vmatpush1.msra.mxu0 %v1009
      %1011 = vmatprep.subr.mxu0 0.0
      %v1012 = vand.u32 %v702, 4294901760
      %1013 = vmatpush1.msra.mxu0 %v1012
      %1014 = vmatprep.subr.mxu0 0.0
      %v1015 = vand.u32 %v703, 4294901760
      %1016 = vmatpush1.msra.mxu0 %v1015
      %1017 = vmatprep.subr.mxu0 0.0
      %v1018 = vand.u32 %v704, 4294901760
      %1019 = vmatpush1.msra.mxu0 %v1018
      %1020 = vmatprep.subr.mxu0 0.0
      %v1021 = vand.u32 %v705, 4294901760
      %1022 = vmatpush1.msra.mxu0 %v1021
      %1023 = vmatprep.subr.mxu0 0.0
      %1024 = vmatpush1.msra.mxu0 0.0
      %1025 = vmatprep.subr.mxu0 0.0
      %1026 = vmatpush1.msra.mxu0 0.0
      %1027 = vmatprep.subr.mxu0 0.0
      %1028 = vmatpush1.msra.mxu0 0.0
      %1029 = vmatprep.subr.mxu0 0.0
      %1030 = vmatpush1.msra.mxu0 0.0
      %1031 = vmatprep.subr.mxu0 0.0
      %1032 = vmatpush1.msra.mxu0 0.0
      %1033 = vmatprep.subr.mxu0 0.0
      %1034 = vmatpush1.msra.mxu0 0.0
      %1035 = vmatprep.subr.mxu0 0.0
      %1036 = vmatpush1.msra.mxu0 0.0
      %1037 = vmatprep.subr.mxu0 0.0
      %1038 = vmatpush1.msra.mxu0 0.0
      %1039 = vmatprep.subr.mxu0 0.0
      %1040 = vmatpush1.msra.mxu0 0.0
      %1041 = vmatprep.subr.mxu0 0.0
      %1042 = vmatpush1.msra.mxu0 0.0
      %1043 = vmatprep.subr.mxu0 0.0
      %1044 = vmatpush1.msra.mxu0 0.0
      %1045 = vmatprep.subr.mxu0 0.0
      %1046 = vmatpush1.msra.mxu0 0.0
      %1047 = vmatprep.subr.mxu0 0.0
      %1048 = vmatpush1.msra.mxu0 0.0
      %1049 = vmatprep.subr.mxu0 0.0
      %1050 = vmatpush1.msra.mxu0 0.0
      %1051 = vmatprep.subr.mxu0 0.0
      %1052 = vmatpush1.msra.mxu0 0.0
      %1053 = vmatprep.subr.mxu0 0.0
      %1054 = vmatpush1.msra.mxu0 0.0
      %1055 = vmatprep.subr.mxu0 0.0
      %1056 = vmatpush1.msra.mxu0 0.0
      %1057 = vmatprep.subr.mxu0 0.0
      %1058 = vmatpush1.msra.mxu0 0.0
      %1059 = vmatprep.subr.mxu0 0.0
      %1060 = vmatpush1.msra.mxu0 0.0
      %1061 = vmatprep.subr.mxu0 0.0
      %1062 = vmatpush1.msra.mxu0 0.0
      %1063 = vmatprep.subr.mxu0 0.0
      %1064 = vmatpush1.msra.mxu0 0.0
      %1065 = vmatprep.subr.mxu0 0.0
      %1066 = vmatpush1.msra.mxu0 0.0
      %1067 = vmatprep.subr.mxu0 0.0
      %1068 = vmatpush1.msra.mxu0 0.0
      %1069 = vmatprep.subr.mxu0 0.0
      %1070 = vmatpush1.msra.mxu0 0.0
      %1071 = vmatprep.mubr.f32.mxu0 0.0
      %v1072 = vand.u32 %v715, 4294901760
      %v1073 = vsub.f32 %v715, %v1072
      %v1074 = vand.u32 %v1073, 4294901760
      %1075 = vmatmul.mubr.f32.gmra.mrb[0].mxu0 %v1074
      %v1076 = vpop.f32.mrb[0].mxu0
      %v1077 = vadd.f32 %v996, %v1076
      %v1078 = vpop.f32.mrb[0].mxu0
      %1079 = vdwg.mxu0
      %1080 = vmatprep.subr.mxu0 0.0
      %v1081 = vand.u32 %v698, 4294901760
      %v1082 = vsub.f32 %v698, %v1081
      %v1083 = vand.u32 %v1082, 4294901760
      %1084 = vmatpush1.msra.mxu0 %v1083
      %1085 = vmatprep.subr.mxu0 0.0
      %v1086 = vand.u32 %v699, 4294901760
      %v1087 = vsub.f32 %v699, %v1086
      %v1088 = vand.u32 %v1087, 4294901760
      %1089 = vmatpush1.msra.mxu0 %v1088
      %1090 = vmatprep.subr.mxu0 0.0
      %v1091 = vand.u32 %v700, 4294901760
      %v1092 = vsub.f32 %v700, %v1091
      %v1093 = vand.u32 %v1092, 4294901760
      %1094 = vmatpush1.msra.mxu0 %v1093
      %1095 = vmatprep.subr.mxu0 0.0
      %v1096 = vand.u32 %v701, 4294901760
      %v1097 = vsub.f32 %v701, %v1096
      %v1098 = vand.u32 %v1097, 4294901760
      %1099 = vmatpush1.msra.mxu0 %v1098
      %1100 = vmatprep.subr.mxu0 0.0
      %v1101 = vand.u32 %v702, 4294901760
      %v1102 = vsub.f32 %v702, %v1101
      %v1103 = vand.u32 %v1102, 4294901760
      %1104 = vmatpush1.msra.mxu0 %v1103
      %1105 = vmatprep.subr.mxu0 0.0
      %v1106 = vand.u32 %v703, 4294901760
      %v1107 = vsub.f32 %v703, %v1106
      %v1108 = vand.u32 %v1107, 4294901760
      %1109 = vmatpush1.msra.mxu0 %v1108
      %1110 = vmatprep.subr.mxu0 0.0
      %v1111 = vand.u32 %v704, 4294901760
      %v1112 = vsub.f32 %v704, %v1111
      %v1113 = vand.u32 %v1112, 4294901760
      %1114 = vmatpush1.msra.mxu0 %v1113
      %1115 = vmatprep.subr.mxu0 0.0
      %v1116 = vand.u32 %v705, 4294901760
      %v1117 = vsub.f32 %v705, %v1116
      %v1118 = vand.u32 %v1117, 4294901760
      %1119 = vmatpush1.msra.mxu0 %v1118
      %1120 = vmatprep.subr.mxu0 0.0
      %1121 = vmatpush1.msra.mxu0 0.0
      %1122 = vmatprep.subr.mxu0 0.0
      %1123 = vmatpush1.msra.mxu0 0.0
      %1124 = vmatprep.subr.mxu0 0.0
      %1125 = vmatpush1.msra.mxu0 0.0
      %1126 = vmatprep.subr.mxu0 0.0
      %1127 = vmatpush1.msra.mxu0 0.0
      %1128 = vmatprep.subr.mxu0 0.0
      %1129 = vmatpush1.msra.mxu0 0.0
      %1130 = vmatprep.subr.mxu0 0.0
      %1131 = vmatpush1.msra.mxu0 0.0
      %1132 = vmatprep.subr.mxu0 0.0
      %1133 = vmatpush1.msra.mxu0 0.0
      %1134 = vmatprep.subr.mxu0 0.0
      %1135 = vmatpush1.msra.mxu0 0.0
      %1136 = vmatprep.subr.mxu0 0.0
      %1137 = vmatpush1.msra.mxu0 0.0
      %1138 = vmatprep.subr.mxu0 0.0
      %1139 = vmatpush1.msra.mxu0 0.0
      %1140 = vmatprep.subr.mxu0 0.0
      %1141 = vmatpush1.msra.mxu0 0.0
      %1142 = vmatprep.subr.mxu0 0.0
      %1143 = vmatpush1.msra.mxu0 0.0
      %1144 = vmatprep.subr.mxu0 0.0
      %1145 = vmatpush1.msra.mxu0 0.0
      %1146 = vmatprep.subr.mxu0 0.0
      %1147 = vmatpush1.msra.mxu0 0.0
      %1148 = vmatprep.subr.mxu0 0.0
      %1149 = vmatpush1.msra.mxu0 0.0
      %1150 = vmatprep.subr.mxu0 0.0
      %1151 = vmatpush1.msra.mxu0 0.0
      %1152 = vmatprep.subr.mxu0 0.0
      %1153 = vmatpush1.msra.mxu0 0.0
      %1154 = vmatprep.subr.mxu0 0.0
      %1155 = vmatpush1.msra.mxu0 0.0
      %1156 = vmatprep.subr.mxu0 0.0
      %1157 = vmatpush1.msra.mxu0 0.0
      %1158 = vmatprep.subr.mxu0 0.0
      %1159 = vmatpush1.msra.mxu0 0.0
      %1160 = vmatprep.subr.mxu0 0.0
      %1161 = vmatpush1.msra.mxu0 0.0
      %1162 = vmatprep.subr.mxu0 0.0
      %1163 = vmatpush1.msra.mxu0 0.0
      %1164 = vmatprep.subr.mxu0 0.0
      %1165 = vmatpush1.msra.mxu0 0.0
      %1166 = vmatprep.subr.mxu0 0.0
      %1167 = vmatpush1.msra.mxu0 0.0
      %1168 = vmatprep.mubr.f32.mxu0 0.0
      %v1169 = vand.u32 %v715, 4294901760
      %1170 = vmatmul.mubr.f32.gmra.mrb[0].mxu0 %v1169
      %v1171 = vpop.f32.mrb[0].mxu0
      %v1172 = vadd.f32 %v1077, %v1171
      %v1173 = vpop.f32.mrb[0].mxu0
      %1174 = vdwg.mxu0
      %1175 = vmatprep.subr.mxu0 0.0
      %v1176 = vand.u32 %v698, 4294901760
      %1177 = vmatpush1.msra.mxu0 %v1176
      %1178 = vmatprep.subr.mxu0 0.0
      %v1179 = vand.u32 %v699, 4294901760
      %1180 = vmatpush1.msra.mxu0 %v1179
      %1181 = vmatprep.subr.mxu0 0.0
      %v1182 = vand.u32 %v700, 4294901760
      %1183 = vmatpush1.msra.mxu0 %v1182
      %1184 = vmatprep.subr.mxu0 0.0
      %v1185 = vand.u32 %v701, 4294901760
      %1186 = vmatpush1.msra.mxu0 %v1185
      %1187 = vmatprep.subr.mxu0 0.0
      %v1188 = vand.u32 %v702, 4294901760
      %1189 = vmatpush1.msra.mxu0 %v1188
      %1190 = vmatprep.subr.mxu0 0.0
      %v1191 = vand.u32 %v703, 4294901760
      %1192 = vmatpush1.msra.mxu0 %v1191
      %1193 = vmatprep.subr.mxu0 0.0
      %v1194 = vand.u32 %v704, 4294901760
      %1195 = vmatpush1.msra.mxu0 %v1194
      %1196 = vmatprep.subr.mxu0 0.0
      %v1197 = vand.u32 %v705, 4294901760
      %1198 = vmatpush1.msra.mxu0 %v1197
      %1199 = vmatprep.subr.mxu0 0.0
      %1200 = vmatpush1.msra.mxu0 0.0
      %1201 = vmatprep.subr.mxu0 0.0
      %1202 = vmatpush1.msra.mxu0 0.0
      %1203 = vmatprep.subr.mxu0 0.0
      %1204 = vmatpush1.msra.mxu0 0.0
      %1205 = vmatprep.subr.mxu0 0.0
      %1206 = vmatpush1.msra.mxu0 0.0
      %1207 = vmatprep.subr.mxu0 0.0
      %1208 = vmatpush1.msra.mxu0 0.0
      %1209 = vmatprep.subr.mxu0 0.0
      %1210 = vmatpush1.msra.mxu0 0.0
      %1211 = vmatprep.subr.mxu0 0.0
      %1212 = vmatpush1.msra.mxu0 0.0
      %1213 = vmatprep.subr.mxu0 0.0
      %1214 = vmatpush1.msra.mxu0 0.0
      %1215 = vmatprep.subr.mxu0 0.0
      %1216 = vmatpush1.msra.mxu0 0.0
      %1217 = vmatprep.subr.mxu0 0.0
      %1218 = vmatpush1.msra.mxu0 0.0
      %1219 = vmatprep.subr.mxu0 0.0
      %1220 = vmatpush1.msra.mxu0 0.0
      %1221 = vmatprep.subr.mxu0 0.0
      %1222 = vmatpush1.msra.mxu0 0.0
      %1223 = vmatprep.subr.mxu0 0.0
      %1224 = vmatpush1.msra.mxu0 0.0
      %1225 = vmatprep.subr.mxu0 0.0
      %1226 = vmatpush1.msra.mxu0 0.0
      %1227 = vmatprep.subr.mxu0 0.0
      %1228 = vmatpush1.msra.mxu0 0.0
      %1229 = vmatprep.subr.mxu0 0.0
      %1230 = vmatpush1.msra.mxu0 0.0
      %1231 = vmatprep.subr.mxu0 0.0
      %1232 = vmatpush1.msra.mxu0 0.0
      %1233 = vmatprep.subr.mxu0 0.0
      %1234 = vmatpush1.msra.mxu0 0.0
      %1235 = vmatprep.subr.mxu0 0.0
      %1236 = vmatpush1.msra.mxu0 0.0
      %1237 = vmatprep.subr.mxu0 0.0
      %1238 = vmatpush1.msra.mxu0 0.0
      %1239 = vmatprep.subr.mxu0 0.0
      %1240 = vmatpush1.msra.mxu0 0.0
      %1241 = vmatprep.subr.mxu0 0.0
      %1242 = vmatpush1.msra.mxu0 0.0
      %1243 = vmatprep.subr.mxu0 0.0
      %1244 = vmatpush1.msra.mxu0 0.0
      %1245 = vmatprep.subr.mxu0 0.0
      %1246 = vmatpush1.msra.mxu0 0.0
      %1247 = vmatprep.mubr.f32.mxu0 0.0
      %v1248 = vand.u32 %v715, 4294901760
      %1249 = vmatmul.mubr.f32.gmra.mrb[0].mxu0 %v1248
      %v1250 = vpop.f32.mrb[0].mxu0
      %v1251 = vadd.f32 %v1172, %v1250
      %v1252 = vpop.f32.mrb[0].mxu0
      %1253 = vdwg.mxu0
      %vm1254 = vcmask 31744
      %1255 = vst.msk [vmem:[%s219] sm:$0xff] %vm1254, %v1251
      %p1256 = scmp.lt.s32.totalorder %s16, 1
      %s1257 = scalar_select %p1256, %s16, 1
      %s1258 = smul.addr %s1257, 8
      %s1259 = scalar_lea.vmem %s5, %s1258
      // Predicated region
      $region41: #{tpu_custom_call.1} parent=39 // pred_check
        %p1260 = pneg %p144
      $region42: #{tpu_custom_call.1} parent=39 // pred_check_branch
        %1262 = sbr.rel (%p1260) target = $region44
      $region43: #{tpu_custom_call.1} parent=39 // pred_region
        _
      $region44: #{tpu_custom_call.1} parent=39 // pred_fallthru
        _
    $region40: #{tpu_custom_call.1} parent=5 // pred_fallthru
      _
    %p1263 = scmp.le.s32.totalorder 2, %s11
    // Predicated region
    $region45: #{tpu_custom_call.1} parent=5 // pred_check
      %p1264 = pneg %p1263
    $region46: #{tpu_custom_call.1} parent=5 // pred_check_branch
      %1266 = sbr.rel (%p1264) target = $region48
    $region47: #{tpu_custom_call.1} parent=5 // pred_region
      %s1267 = ssub.s32 %s11, 2
      // Predicated region
      $region49: #{tpu_custom_call.1} parent=47 // pred_check
        %p1268 = pneg %p150
      $region50: #{tpu_custom_call.1} parent=47 // pred_check_branch
        %1270 = sbr.rel (%p1268) target = $region52
      $region51: #{tpu_custom_call.1} parent=47 // pred_region
        %p1271 = scmp.lt.s32.totalorder %s17, 1
        %s1272 = scalar_select %p1271, %s17, 1
        %s1273 = smul.addr %s1272, 8
        %s1274 = scalar_lea.vmem %s5, %s1273
      $region52: #{tpu_custom_call.1} parent=47 // pred_fallthru
        _
    $region48: #{tpu_custom_call.1} parent=5 // pred_fallthru
      _
  $region6: #{tpu_custom_call.1} parent=0 // loop_footer
    %s15 = sadd.s32 1, %s11
  $region7: #{tpu_custom_call.1} parent=0 // loop_footer_branch
    %10 = sbr.rel target = $region3
  $region8: #{tpu_custom_call.1} parent=0 // loop_exit
    _

</llo_original>
